<compile_context>
chip_gen: v7x
topology: tpu7x:2x2x1
jax: 0.10.0
libtpu: 0.0.40
codegen_flags: <defaults>
</compile_context>

<pallas_src>
import functools

import jax
import jax.numpy as jnp
from jax.experimental import pallas as pl
from jax.experimental.pallas import tpu as pltpu


def _round_up(x, m):
    return ((x + m - 1) // m) * m


# ---------------------------------------------------------------------------
# Pallas kernel: whole forward pass (3 matmuls + 2 tanh) for one batch tile.
# Activations are kept batch-on-lanes: (hid, batch_tile) throughout.
# ---------------------------------------------------------------------------
def valuenet_kernel(x_ref, w1t_ref, b1_ref, w2t_ref, b2_ref, w3t_ref, b3t_ref,
                    o_ref, *, act_dtype):
    # Cast the streamed f32 x tile to bf16 in VMEM (VPU op, hidden under MXU).
    xb = x_ref[...].astype(jnp.bfloat16)                       # (bt, in)

    # Layer 1, batch-on-lanes: contract in_dim of w1^T with in_dim of x
    #   (hid, in) . (bt, in)^T -> (hid, bt), f32 accumulate on the MXU.
    h = jax.lax.dot_general(
        w1t_ref[...], xb,
        dimension_numbers=(((1,), (1,)), ((), ())),
        preferred_element_type=jnp.float32,
    )
    h = jnp.tanh((h + b1_ref[...]).astype(act_dtype))          # bias (hid,1) bcast over lanes

    # Layer 2: (hid, hid) @ (hid, bt) -> (hid, bt)
    h = jnp.dot(w2t_ref[...], h.astype(jnp.bfloat16),
                preferred_element_type=jnp.float32)
    h = jnp.tanh((h + b2_ref[...]).astype(act_dtype))

    # Layer 3: (out, hid) @ (hid, bt) -> lane-dense (out, bt), no transpose.
    out = jnp.dot(w3t_ref[...], h.astype(jnp.bfloat16),
                  preferred_element_type=jnp.float32) + b3t_ref[...]

    o_ref[...] = out.astype(o_ref.dtype)


# ---------------------------------------------------------------------------
# Tile selection
# ---------------------------------------------------------------------------
def _choose_tiling(B, in_dim, requested=None):
    """Pick (batch_tile, padded_B).  Tiles are multiples of 128 (lane-dense out)."""
    if requested is not None:
        target = max(128, _round_up(int(requested), 128))
    else:
        # Aim for ~1 MiB of f32 x per grid step so DMA + compute dwarf the
        # ~0.35 us fixed per-step overhead; cap so per-tile VMEM stays small.
        target = min(8192, max(128, _round_up((1 << 20) // (4 * in_dim), 128)))

    if B <= target:
        if B >= 1024:
            # Keep >= 2 grid steps so "parallel" can shard across v7x's 2 TCs.
            tile = _round_up(-(-B // 2), 128)
        else:
            tile = _round_up(B, 128)
        return tile, _round_up(B, tile)

    # Prefer a tile that divides B exactly: avoids a full jnp.pad copy of x.
    if B % 128 == 0:
        cand = target
        while cand >= max(128, target // 2):
            if B % cand == 0:
                return cand, B
            cand -= 128

    # Otherwise balance the tiles so the padded tail is smaller than one tile.
    n_tiles = -(-B // target)
    tile = _round_up(-(-B // n_tiles), 128)
    return tile, _round_up(B, tile)


# ---------------------------------------------------------------------------
# Wrapper
# ---------------------------------------------------------------------------
def valuenet_forward(x, params, *, batch_tile=None, tanh_in_bf16=False):
    """ValueNet forward pass with a Pallas TPU kernel.

    x      : [B, input_size] float32
    params : dict with w1 [in,h], b1 [1,h], w2 [h,h], b2 [1,h],
             w3 [h,out], b3 [1,out]   (weights stored [in, out], i.e. torch W^T)
    tanh_in_bf16 : set True on v6e/v7x (bf16-native VPU/EUP); keep False on v5e.
    """
    w1, b1, w2, b2, w3, b3 = (params["w1"], params["b1"], params["w2"],
                              params["b2"], params["w3"], params["b3"])
    B, in_dim = x.shape
    hid = w1.shape[1]
    out_dim = w3.shape[1]

    tile, B_pad = _choose_tiling(B, in_dim, batch_tile)

    x_in = x if x.dtype == jnp.float32 else x.astype(jnp.float32)
    if B_pad != B:
        # Only hit when no exact-divisor tile exists (ragged tail); padded rows
        # flow through tanh(bias) and are sliced off below.
        x_in = jnp.pad(x_in, ((0, B_pad - B), (0, 0)))

    # Weights transposed once (tiny) so every layer runs batch-on-lanes.
    w1t = jnp.transpose(w1).astype(jnp.bfloat16)     # (hid, in)
    w2t = jnp.transpose(w2).astype(jnp.bfloat16)     # (hid, hid)
    w3t = jnp.transpose(w3).astype(jnp.bfloat16)     # (out, hid)
    b1t = jnp.transpose(b1).astype(jnp.float32)      # (hid, 1)
    b2t = jnp.transpose(b2).astype(jnp.float32)      # (hid, 1)
    b3t = jnp.transpose(b3).astype(jnp.float32)      # (out, 1)

    grid = (B_pad // tile,)
    resident = lambda shape: pl.BlockSpec(shape, lambda i: (0, 0))

    kernel = functools.partial(
        valuenet_kernel,
        act_dtype=jnp.bfloat16 if tanh_in_bf16 else jnp.float32)

    out_t = pl.pallas_call(
        kernel,
        out_shape=jax.ShapeDtypeStruct((out_dim, B_pad), jnp.float32),
        grid_spec=pltpu.PrefetchScalarGridSpec(
            num_scalar_prefetch=0,
            grid=grid,
            in_specs=[
                pl.BlockSpec((tile, in_dim), lambda i: (i, 0)),  # x (streamed, f32)
                resident((hid, in_dim)),    # w1^T
                resident((hid, 1)),         # b1^T
                resident((hid, hid)),       # w2^T
                resident((hid, 1)),         # b2^T
                resident((out_dim, hid)),   # w3^T
                resident((out_dim, 1)),     # b3^T
            ],
            # Lane-dense output: batch lives on the lane axis.
            out_specs=pl.BlockSpec((out_dim, tile), lambda i: (0, i)),
        ),
        compiler_params=pltpu.CompilerParams(
            dimension_semantics=("parallel",),
            vmem_limit_bytes=32 * 1024 * 1024,
        ),
    )(x_in, w1t, b1t, w2t, b2t, w3t, b3t)

    # [out_dim, B_pad] -> [B, out_dim]  (tiny; trivial when out_dim == 1)
    return jnp.transpose(out_t)[:B]


# ---------------------------------------------------------------------------
# Deterministic parameter init mirroring initialize_layer():
#   orthogonal weight with gain=std, constant bias = 0.
# ---------------------------------------------------------------------------
def orthogonal_linear(key, in_dim, out_dim, std):
    w_torch_layout = jax.nn.initializers.orthogonal(scale=std)(
        key, (out_dim, in_dim), jnp.float32
    )
    w = jnp.transpose(w_torch_layout)          # [in, out]
    b = jnp.zeros((1, out_dim), jnp.float32)   # bias_const = 0.0
    return w, b


def init_valuenet_params(key, input_size, output_size, hidden_size=64):
    k1, k2, k3 = jax.random.split(key, 3)
    sqrt2 = float(jnp.sqrt(2.0))
    w1, b1 = orthogonal_linear(k1, input_size, hidden_size, sqrt2)
    w2, b2 = orthogonal_linear(k2, hidden_size, hidden_size, sqrt2)
    w3, b3 = orthogonal_linear(k3, hidden_size, output_size, 1.0)
    return dict(w1=w1, b1=b1, w2=w2, b2=b2, w3=w3, b3=b3)


# ---------------------------------------------------------------------------
# References
# ---------------------------------------------------------------------------
def valuenet_reference_f32(x, p):
    h = jnp.tanh(x @ p["w1"] + p["b1"])
    h = jnp.tanh(h @ p["w2"] + p["b2"])
    return h @ p["w3"] + p["b3"]


def valuenet_reference_matched(x, p, dtype=jnp.bfloat16):
    """Same precision recipe as the kernel (bf16 matmul operands, f32 accum/tanh)."""
    h = jnp.dot(x.astype(dtype), p["w1"].astype(dtype),
                preferred_element_type=jnp.float32) + p["b1"]
    h = jnp.tanh(h)
    h = jnp.dot(h.astype(dtype), p["w2"].astype(dtype),
                preferred_element_type=jnp.float32) + p["b2"]
    h = jnp.tanh(h)
    return jnp.dot(h.astype(dtype), p["w3"].astype(dtype),
                   preferred_element_type=jnp.float32) + p["b3"]


if __name__ == "__main__":
    key = jax.random.PRNGKey(0)
    k_param, k_x = jax.random.split(key)

    input_size, hidden_size, output_size = 32, 64, 1
    params = init_valuenet_params(k_param, input_size, output_size, hidden_size)

    # Small primary case (batch=8) plus a ragged and a multi-tile case.
    for batch, tile_arg in ((8, None), (300, None), (2048, 512)):
        kx = jax.random.fold_in(k_x, batch)
        x = jax.random.normal(kx, (batch, input_size), jnp.float32)

        out = jax.block_until_ready(
            valuenet_forward(x, params, batch_tile=tile_arg))
        assert out.shape == (batch, output_size), out.shape

        ref_matched = valuenet_reference_matched(x, params)
        ref_f32 = valuenet_reference_f32(x, params)
        assert jnp.allclose(out, ref_matched, atol=5e-3, rtol=5e-3), \
            f"batch={batch}: mismatch vs matched-precision (bf16 MXU) reference"
        assert jnp.allclose(out, ref_f32, atol=5e-2, rtol=5e-2), \
            f"batch={batch}: mismatch vs f32 reference"

    print("KERNEL_OK")
</pallas_src>

<mosaic_0001>
module attributes {stable_mosaic.version = 11 : i64} {
  func.func @valuenet_kernel(%arg0: i32, %arg1: memref<128x32xf32, #tpu.memory_space<vmem>>, %arg2: memref<64x32xbf16, #tpu.memory_space<vmem>>, %arg3: memref<64x1xf32, #tpu.memory_space<vmem>>, %arg4: memref<64x64xbf16, #tpu.memory_space<vmem>>, %arg5: memref<64x1xf32, #tpu.memory_space<vmem>>, %arg6: memref<1x64xbf16, #tpu.memory_space<vmem>>, %arg7: memref<1x1xf32, #tpu.memory_space<vmem>>, %arg8: memref<1x128xf32, #tpu.memory_space<vmem>>) attributes {dimension_semantics = [#tpu.dimension_semantics<parallel>], iteration_bounds = array<i64: 1>, scalar_prefetch = 0 : i64, scratch_operands = 0 : i64, tpu.core_type = #tpu.core_type<tc>, window_params = [{transform_indices = @transform_0, window_bounds = array<i64: 128, 32>}, {pipeline_mode = #tpu.pipeline_mode<synchronous>, transform_indices = @transform_1, window_bounds = array<i64: 64, 32>}, {pipeline_mode = #tpu.pipeline_mode<synchronous>, transform_indices = @transform_2, window_bounds = array<i64: 64, 1>}, {pipeline_mode = #tpu.pipeline_mode<synchronous>, transform_indices = @transform_3, window_bounds = array<i64: 64, 64>}, {pipeline_mode = #tpu.pipeline_mode<synchronous>, transform_indices = @transform_4, window_bounds = array<i64: 64, 1>}, {pipeline_mode = #tpu.pipeline_mode<synchronous>, transform_indices = @transform_5, window_bounds = array<i64: 1, 64>}, {pipeline_mode = #tpu.pipeline_mode<synchronous>, transform_indices = @transform_6, window_bounds = array<i64: 1, 1>}, {transform_indices = @transform_7, window_bounds = array<i64: 1, 128>}]} {
    %c0 = arith.constant 0 : index
    %c0_0 = arith.constant 0 : index
    %0 = vector.load %arg1[%c0, %c0_0] : memref<128x32xf32, #tpu.memory_space<vmem>>, vector<128x32xf32>
    %1 = arith.truncf %0 : vector<128x32xf32> to vector<128x32xbf16>
    %c0_1 = arith.constant 0 : index
    %c0_2 = arith.constant 0 : index
    %2 = vector.load %arg2[%c0_1, %c0_2] : memref<64x32xbf16, #tpu.memory_space<vmem>>, vector<64x32xbf16>
    %cst = arith.constant dense<0.000000e+00> : vector<64x128xf32>
    %3 = tpu.matmul %2, %1, %cst {dimension_numbers = #tpu.dot_dimension_numbers<[1], [1], [0], [0], [0, 0, 1, 0], [], []>} : vector<64x32xbf16>, vector<128x32xbf16>, vector<64x128xf32> -> vector<64x128xf32>
    %c0_3 = arith.constant 0 : index
    %c0_4 = arith.constant 0 : index
    %4 = vector.load %arg3[%c0_3, %c0_4] : memref<64x1xf32, #tpu.memory_space<vmem>>, vector<64x1xf32>
    %5 = vector.broadcast %4 : vector<64x1xf32> to vector<64x128xf32>
    %6 = arith.addf %3, %5 : vector<64x128xf32>
    %7 = math.tanh %6 : vector<64x128xf32>
    %c0_5 = arith.constant 0 : index
    %c0_6 = arith.constant 0 : index
    %8 = vector.load %arg4[%c0_5, %c0_6] : memref<64x64xbf16, #tpu.memory_space<vmem>>, vector<64x64xbf16>
    %9 = arith.truncf %7 : vector<64x128xf32> to vector<64x128xbf16>
    %cst_7 = arith.constant dense<0.000000e+00> : vector<64x128xf32>
    %10 = tpu.matmul %8, %9, %cst_7 {dimension_numbers = #tpu.dot_dimension_numbers<[1], [0], [0], [1], [0, 0, 1, 1], [], []>} : vector<64x64xbf16>, vector<64x128xbf16>, vector<64x128xf32> -> vector<64x128xf32>
    %c0_8 = arith.constant 0 : index
    %c0_9 = arith.constant 0 : index
    %11 = vector.load %arg5[%c0_8, %c0_9] : memref<64x1xf32, #tpu.memory_space<vmem>>, vector<64x1xf32>
    %12 = vector.broadcast %11 : vector<64x1xf32> to vector<64x128xf32>
    %13 = arith.addf %10, %12 : vector<64x128xf32>
    %14 = math.tanh %13 : vector<64x128xf32>
    %c0_10 = arith.constant 0 : index
    %c0_11 = arith.constant 0 : index
    %15 = vector.load %arg6[%c0_10, %c0_11] : memref<1x64xbf16, #tpu.memory_space<vmem>>, vector<1x64xbf16>
    %16 = arith.truncf %14 : vector<64x128xf32> to vector<64x128xbf16>
    %cst_12 = arith.constant dense<0.000000e+00> : vector<1x128xf32>
    %17 = tpu.matmul %15, %16, %cst_12 {dimension_numbers = #tpu.dot_dimension_numbers<[1], [0], [0], [1], [0, 0, 1, 1], [], []>} : vector<1x64xbf16>, vector<64x128xbf16>, vector<1x128xf32> -> vector<1x128xf32>
    %c0_13 = arith.constant 0 : index
    %c0_14 = arith.constant 0 : index
    %18 = vector.load %arg7[%c0_13, %c0_14] : memref<1x1xf32, #tpu.memory_space<vmem>>, vector<1x1xf32>
    %19 = vector.broadcast %18 : vector<1x1xf32> to vector<1x128xf32>
    %20 = arith.addf %17, %19 : vector<1x128xf32>
    %c0_15 = arith.constant 0 : index
    %c0_16 = arith.constant 0 : index
    %21 = vector.load %arg8[%c0_15, %c0_16] : memref<1x128xf32, #tpu.memory_space<vmem>>, vector<1x128xf32>
    tpu.vector_store %arg8[%c0_15, %c0_16], %20 {strides = array<i32>} : memref<1x128xf32, #tpu.memory_space<vmem>>, vector<1x128xf32>,
    return
  }
  func.func @transform_0(%arg0: i32) -> (i32, i32) {
    %c0_i32 = arith.constant 0 : i32
    %c0_i32_0 = arith.constant 0 : i32
    return %arg0, %c0_i32 : i32, i32
  }
  func.func @transform_1(%arg0: i32) -> (i32, i32) {
    %c0_i32 = arith.constant 0 : i32
    %c0_i32_0 = arith.constant 0 : i32
    %c0_i32_1 = arith.constant 0 : i32
    return %c0_i32, %c0_i32_0 : i32, i32
  }
  func.func @transform_2(%arg0: i32) -> (i32, i32) {
    %c0_i32 = arith.constant 0 : i32
    %c0_i32_0 = arith.constant 0 : i32
    %c0_i32_1 = arith.constant 0 : i32
    return %c0_i32, %c0_i32_0 : i32, i32
  }
  func.func @transform_3(%arg0: i32) -> (i32, i32) {
    %c0_i32 = arith.constant 0 : i32
    %c0_i32_0 = arith.constant 0 : i32
    %c0_i32_1 = arith.constant 0 : i32
    return %c0_i32, %c0_i32_0 : i32, i32
  }
  func.func @transform_4(%arg0: i32) -> (i32, i32) {
    %c0_i32 = arith.constant 0 : i32
    %c0_i32_0 = arith.constant 0 : i32
    %c0_i32_1 = arith.constant 0 : i32
    return %c0_i32, %c0_i32_0 : i32, i32
  }
  func.func @transform_5(%arg0: i32) -> (i32, i32) {
    %c0_i32 = arith.constant 0 : i32
    %c0_i32_0 = arith.constant 0 : i32
    %c0_i32_1 = arith.constant 0 : i32
    return %c0_i32, %c0_i32_0 : i32, i32
  }
  func.func @transform_6(%arg0: i32) -> (i32, i32) {
    %c0_i32 = arith.constant 0 : i32
    %c0_i32_0 = arith.constant 0 : i32
    %c0_i32_1 = arith.constant 0 : i32
    return %c0_i32, %c0_i32_0 : i32, i32
  }
  func.func @transform_7(%arg0: i32) -> (i32, i32) {
    %c0_i32 = arith.constant 0 : i32
    %c0_i32_0 = arith.constant 0 : i32
    return %c0_i32, %arg0 : i32, i32
  }
}

</mosaic_0001>

<llo_original>
// kernel: tpu_custom_call.1
$region0: #{tpu_custom_call.1}
  #allocation0 [shape = 'u32[]', space=smem, size = 0x4, offset = 0x4, fixed_abs, tag = 'smem constant byte address 0x4 - core index']
  #allocation1 [shape = 'u32[144,128]{1,0:T(1,128)}', space=vmem, size = 0x12000, scoped, tag = 'internal scratch']
  #allocation2 [shape = 'f32[1,1]{1,0:T(1,128)S(1)}', space=vmem, size = 0x200, scoped, tag = 'scoped memory for tpu_custom_call.1']
  %s0 = inlined_call_operand.vmem [shape: f32[128,32], index: 0, kind: input, shape index: {}]
  %s1 = inlined_call_operand.vmem [shape: bf16[64,32], index: 1, kind: input, shape index: {}]
  %s2 = inlined_call_operand.vmem [shape: f32[64,1], index: 2, kind: input, shape index: {}]
  %s3 = inlined_call_operand.vmem [shape: bf16[64,64], index: 3, kind: input, shape index: {}]
  %s4 = inlined_call_operand.vmem [shape: f32[64,1], index: 4, kind: input, shape index: {}]
  %s5 = inlined_call_operand.vmem [shape: bf16[1,64], index: 5, kind: input, shape index: {}]
  %s6 = inlined_call_operand.<no memory space> [shape: f32[1,1], index: 6, kind: input, shape index: {}]
  %s7 = inlined_call_operand.hbm [shape: f32[1,128], index: 7, kind: output, shape index: {}]
  %s8 = sld [smem:[#allocation0]]
  $region38: #{tpu_custom_call.1} parent=0
    _
  %s10 = ssub.s32 1, %s8
  %s11 = scalar_select 0, %s10, %s8
  %v12 = vstv %s6
  %13 = vst [vmem:[#allocation2] sm:$0x1] %v12
  $region1: #{tpu_custom_call.1} parent=0
    #allocation3 [shape = 'u8[512]{0}', space=vmem, size = 0x400, scoped, tag = 'output window, operand 0, single buffered']
    #allocation4 [shape = 's32[1]{0}', space=sflag, size = 0x4, scoped, tag = 'scoped memory for tpu_custom_call.1']
    %14 = vsyncpa [#allocation4], 0
    // Predicated region
    $region2: #{tpu_custom_call.1} parent=1 // pred_check
      _
    $region3: #{tpu_custom_call.1} parent=1 // pred_check_branch
      %16 = sbr.rel (0) target = $region5
    $region4: #{tpu_custom_call.1} parent=1 // pred_region
      _
    $region5: #{tpu_custom_call.1} parent=1 // pred_fallthru
      _
    // Predicated region
    $region6: #{tpu_custom_call.1} parent=1 // pred_check
      _
    $region7: #{tpu_custom_call.1} parent=1 // pred_check_branch
      %18 = sbr.rel (0) target = $region9
    $region8: #{tpu_custom_call.1} parent=1 // pred_region
      _
    $region9: #{tpu_custom_call.1} parent=1 // pred_fallthru
      _
    // Predicated region
    $region10: #{tpu_custom_call.1} parent=1 // pred_check
      _
    $region11: #{tpu_custom_call.1} parent=1 // pred_check_branch
      %20 = sbr.rel (0) target = $region13
    $region12: #{tpu_custom_call.1} parent=1 // pred_region
      _
    $region13: #{tpu_custom_call.1} parent=1 // pred_fallthru
      _
    // Predicated region
    $region14: #{tpu_custom_call.1} parent=1 // pred_check
      _
    $region15: #{tpu_custom_call.1} parent=1 // pred_check_branch
      %22 = sbr.rel (0) target = $region17
    $region16: #{tpu_custom_call.1} parent=1 // pred_region
      _
    $region17: #{tpu_custom_call.1} parent=1 // pred_fallthru
      _
    // Predicated region
    $region18: #{tpu_custom_call.1} parent=1 // pred_check
      _
    $region19: #{tpu_custom_call.1} parent=1 // pred_check_branch
      %24 = sbr.rel (0) target = $region21
    $region20: #{tpu_custom_call.1} parent=1 // pred_region
      _
    $region21: #{tpu_custom_call.1} parent=1 // pred_fallthru
      _
    // Predicated region
    $region22: #{tpu_custom_call.1} parent=1 // pred_check
      _
    $region23: #{tpu_custom_call.1} parent=1 // pred_check_branch
      %26 = sbr.rel (0) target = $region25
    $region24: #{tpu_custom_call.1} parent=1 // pred_region
      _
    $region25: #{tpu_custom_call.1} parent=1 // pred_fallthru
      _
    // Predicated region
    $region26: #{tpu_custom_call.1} parent=1 // pred_check
      _
    $region27: #{tpu_custom_call.1} parent=1 // pred_check_branch
      %28 = sbr.rel (0) target = $region29
    $region28: #{tpu_custom_call.1} parent=1 // pred_region
      _
    $region29: #{tpu_custom_call.1} parent=1 // pred_fallthru
      _
    %v30 = vld [vmem:[%s0] sm:$0xff]
    %v31 = vld [vmem:[%s0 + $0x8] sm:$0xff]
    %v32 = vld [vmem:[%s0 + $0x10] sm:$0xff]
    %v33 = vld [vmem:[%s0 + $0x18] sm:$0xff]
    %v34 = vld [vmem:[%s0 + $0x20] sm:$0xff]
    %v35 = vld [vmem:[%s0 + $0x28] sm:$0xff]
    %v36 = vld [vmem:[%s0 + $0x30] sm:$0xff]
    %v37 = vld [vmem:[%s0 + $0x38] sm:$0xff]
    %v38 = vld [vmem:[%s0 + $0x40] sm:$0xff]
    %v39 = vld [vmem:[%s0 + $0x48] sm:$0xff]
    %v40 = vld [vmem:[%s0 + $0x50] sm:$0xff]
    %v41 = vld [vmem:[%s0 + $0x58] sm:$0xff]
    %v42 = vld [vmem:[%s0 + $0x60] sm:$0xff]
    %v43 = vld [vmem:[%s0 + $0x68] sm:$0xff]
    %v44 = vld [vmem:[%s0 + $0x70] sm:$0xff]
    %v45 = vld [vmem:[%s0 + $0x78] sm:$0xff]
    %v46 = vpack.c.bf16 %v31, %v30
    %v47 = vpack.c.bf16 %v33, %v32
    %v48 = vpack.c.bf16 %v35, %v34
    %v49 = vpack.c.bf16 %v37, %v36
    %v50 = vpack.c.bf16 %v39, %v38
    %v51 = vpack.c.bf16 %v41, %v40
    %v52 = vpack.c.bf16 %v43, %v42
    %v53 = vpack.c.bf16 %v45, %v44
    %v54 = vld [vmem:[%s1] sm:$0xf]
    %v55 = vld [vmem:[%s1 + $0x4] sm:$0xf]
    %v56 = vld [vmem:[%s1 + $0x8] sm:$0xf]
    %v57 = vld [vmem:[%s1 + $0xc] sm:$0xf]
    %v58 = vld [vmem:[%s1 + $0x10] sm:$0xf]
    %v59 = vld [vmem:[%s1 + $0x14] sm:$0xf]
    %v60 = vld [vmem:[%s1 + $0x18] sm:$0xf]
    %v61 = vld [vmem:[%s1 + $0x1c] sm:$0xf]
    %v62 = vld [vmem:[%s2] sm:$0xff]
    %v63 = vld [vmem:[%s2 + $0x8] sm:$0xff]
    %v64 = vld [vmem:[%s2 + $0x10] sm:$0xff]
    %v65 = vld [vmem:[%s2 + $0x18] sm:$0xff]
    %v66 = vld [vmem:[%s2 + $0x20] sm:$0xff]
    %v67 = vld [vmem:[%s2 + $0x28] sm:$0xff]
    %v68 = vld [vmem:[%s2 + $0x30] sm:$0xff]
    %v69 = vld [vmem:[%s2 + $0x38] sm:$0xff]
    %71 = vset.pattern.permute.xlu0 0
    %72 = vperm.xlu0 %71, %v62
    %v73 = vpop.permute.xlu0 %72
    %76 = vset.pattern.permute.xlu0 0
    %77 = vperm.xlu0 %76, %v63
    %v78 = vpop.permute.xlu0 %77
    %81 = vset.pattern.permute.xlu0 0
    %82 = vperm.xlu0 %81, %v64
    %v83 = vpop.permute.xlu0 %82
    %86 = vset.pattern.permute.xlu0 0
    %87 = vperm.xlu0 %86, %v65
    %v88 = vpop.permute.xlu0 %87
    %91 = vset.pattern.permute.xlu0 0
    %92 = vperm.xlu0 %91, %v66
    %v93 = vpop.permute.xlu0 %92
    %96 = vset.pattern.permute.xlu0 0
    %97 = vperm.xlu0 %96, %v67
    %v98 = vpop.permute.xlu0 %97
    %101 = vset.pattern.permute.xlu0 0
    %102 = vperm.xlu0 %101, %v68
    %v103 = vpop.permute.xlu0 %102
    %106 = vset.pattern.permute.xlu0 0
    %107 = vperm.xlu0 %106, %v69
    %v108 = vpop.permute.xlu0 %107
    %v118 = vunpack.c.l.b16 %v54
    %v119 = vunpack.c.l.b16 %v55
    %v120 = vunpack.c.l.b16 %v56
    %v121 = vunpack.c.l.b16 %v57
    %v122 = vunpack.c.l.b16 %v58
    %v123 = vunpack.c.l.b16 %v59
    %v124 = vunpack.c.l.b16 %v60
    %v125 = vunpack.c.l.b16 %v61
    %v126 = vpack.c.b16 %v119, %v118
    %v127 = vpack.c.b16 %v121, %v120
    %v128 = vpack.c.b16 %v123, %v122
    %v129 = vpack.c.b16 %v125, %v124
    %vm130 = vcmask 261120
    %v132 = vsel %vm130, %v126, 0
    %v135 = vsel %vm130, %v127, 0
    %v138 = vsel %vm130, %v128, 0
    %v141 = vsel %vm130, %v129, 0
    %v144 = vsel %vm130, %v46, 0
    %v147 = vsel %vm130, %v47, 0
    %v150 = vsel %vm130, %v48, 0
    %v153 = vsel %vm130, %v49, 0
    %v156 = vsel %vm130, %v50, 0
    %v159 = vsel %vm130, %v51, 0
    %v162 = vsel %vm130, %v52, 0
    %v165 = vsel %vm130, %v53, 0
    %167 = vmatprep.subr.bf16.mxu0 0
    %168 = vmatpush1.bf16.xpose.msra.mxu0 %v144
    %169 = vmatprep.subr.bf16.mxu0 0
    %170 = vmatpush1.bf16.xpose.msra.mxu0 %v147
    %171 = vmatprep.subr.bf16.mxu0 0
    %172 = vmatpush1.bf16.xpose.msra.mxu0 %v150
    %173 = vmatprep.subr.bf16.mxu0 0
    %174 = vmatpush1.bf16.xpose.msra.mxu0 %v153
    %175 = vmatprep.subr.bf16.mxu0 0
    %176 = vmatpush1.bf16.xpose.msra.mxu0 %v156
    %177 = vmatprep.subr.bf16.mxu0 0
    %178 = vmatpush1.bf16.xpose.msra.mxu0 %v159
    %179 = vmatprep.subr.bf16.mxu0 0
    %180 = vmatpush1.bf16.xpose.msra.mxu0 %v162
    %181 = vmatprep.subr.bf16.mxu0 0
    %182 = vmatpush1.bf16.xpose.msra.mxu0 %v165
    %183 = vmatprep.subr.bf16.mxu0 0
    %184 = vmatpush1.bf16.xpose.msra.mxu0 0
    %185 = vmatprep.subr.bf16.mxu0 0
    %186 = vmatpush1.bf16.xpose.msra.mxu0 0
    %187 = vmatprep.subr.bf16.mxu0 0
    %188 = vmatpush1.bf16.xpose.msra.mxu0 0
    %189 = vmatprep.subr.bf16.mxu0 0
    %190 = vmatpush1.bf16.xpose.msra.mxu0 0
    %191 = vmatprep.subr.bf16.mxu0 0
    %192 = vmatpush1.bf16.xpose.msra.mxu0 0
    %193 = vmatprep.subr.bf16.mxu0 0
    %194 = vmatpush1.bf16.xpose.msra.mxu0 0
    %195 = vmatprep.subr.bf16.mxu0 0
    %196 = vmatpush1.bf16.xpose.msra.mxu0 0
    %197 = vmatprep.subr.bf16.mxu0 0
    %198 = vmatpush1.bf16.xpose.msra.mxu0 0
    %199 = vmatprep.mubr.bf16.mxu0 0
    %200 = vmatmul.mubr.bf16.gmra.mrb[0].mxu0 %v132
    %v201 = vpop.f32.mrb[0].mxu0
    %v202 = vadd.f32 %v73, %v201
    %v203 = vpop.f32.mrb[0].mxu0
    %v204 = vpop.f32.mrb[0].mxu0
    %v205 = vadd.f32 %v78, %v204
    %v206 = vpop.f32.mrb[0].mxu0
    %207 = vmatprep.mubr.bf16.mxu0 0
    %208 = vmatmul.mubr.bf16.gmra.mrb[0].mxu0 %v135
    %v209 = vpop.f32.mrb[0].mxu0
    %v210 = vadd.f32 %v83, %v209
    %v211 = vpop.f32.mrb[0].mxu0
    %v212 = vpop.f32.mrb[0].mxu0
    %v213 = vadd.f32 %v88, %v212
    %v214 = vpop.f32.mrb[0].mxu0
    %215 = vmatprep.mubr.bf16.mxu0 0
    %216 = vmatmul.mubr.bf16.gmra.mrb[0].mxu0 %v138
    %v217 = vpop.f32.mrb[0].mxu0
    %v218 = vadd.f32 %v93, %v217
    %v219 = vpop.f32.mrb[0].mxu0
    %v220 = vpop.f32.mrb[0].mxu0
    %v221 = vadd.f32 %v98, %v220
    %v222 = vpop.f32.mrb[0].mxu0
    %223 = vmatprep.mubr.bf16.mxu0 0
    %224 = vmatmul.mubr.bf16.gmra.mrb[0].mxu0 %v141
    %v225 = vpop.f32.mrb[0].mxu0
    %v226 = vadd.f32 %v103, %v225
    %v227 = vpop.f32.mrb[0].mxu0
    %v228 = vpop.f32.mrb[0].mxu0
    %v229 = vadd.f32 %v108, %v228
    %v230 = vpop.f32.mrb[0].mxu0
    %231 = vdwg.mxu0
    %v232 = vtanh.pop %v202
    %v233 = vtanh.pop %v205
    %v234 = vtanh.pop %v210
    %v235 = vtanh.pop %v213
    %v236 = vtanh.pop %v218
    %v237 = vtanh.pop %v221
    %v238 = vtanh.pop %v226
    %v239 = vtanh.pop %v229
    %v240 = vld [vmem:[%s3] sm:$0xf]
    %v241 = vld [vmem:[%s3 + $0x4] sm:$0xf]
    %v242 = vld [vmem:[%s3 + $0x8] sm:$0xf]
    %v243 = vld [vmem:[%s3 + $0xc] sm:$0xf]
    %v244 = vld [vmem:[%s3 + $0x10] sm:$0xf]
    %v245 = vld [vmem:[%s3 + $0x14] sm:$0xf]
    %v246 = vld [vmem:[%s3 + $0x18] sm:$0xf]
    %v247 = vld [vmem:[%s3 + $0x1c] sm:$0xf]
    %v248 = vpack.c.bf16 %v233, %v232
    %v249 = vpack.c.bf16 %v235, %v234
    %v250 = vpack.c.bf16 %v237, %v236
    %v251 = vpack.c.bf16 %v239, %v238
    %v252 = vld [vmem:[%s4] sm:$0xff]
    %v253 = vld [vmem:[%s4 + $0x8] sm:$0xff]
    %v254 = vld [vmem:[%s4 + $0x10] sm:$0xff]
    %v255 = vld [vmem:[%s4 + $0x18] sm:$0xff]
    %v256 = vld [vmem:[%s4 + $0x20] sm:$0xff]
    %v257 = vld [vmem:[%s4 + $0x28] sm:$0xff]
    %v258 = vld [vmem:[%s4 + $0x30] sm:$0xff]
    %v259 = vld [vmem:[%s4 + $0x38] sm:$0xff]
    %261 = vset.pattern.permute.xlu0 0
    %262 = vperm.xlu0 %261, %v252
    %v263 = vpop.permute.xlu0 %262
    %266 = vset.pattern.permute.xlu0 0
    %267 = vperm.xlu0 %266, %v253
    %v268 = vpop.permute.xlu0 %267
    %271 = vset.pattern.permute.xlu0 0
    %272 = vperm.xlu0 %271, %v254
    %v273 = vpop.permute.xlu0 %272
    %276 = vset.pattern.permute.xlu0 0
    %277 = vperm.xlu0 %276, %v255
    %v278 = vpop.permute.xlu0 %277
    %281 = vset.pattern.permute.xlu0 0
    %282 = vperm.xlu0 %281, %v256
    %v283 = vpop.permute.xlu0 %282
    %286 = vset.pattern.permute.xlu0 0
    %287 = vperm.xlu0 %286, %v257
    %v288 = vpop.permute.xlu0 %287
    %291 = vset.pattern.permute.xlu0 0
    %292 = vperm.xlu0 %291, %v258
    %v293 = vpop.permute.xlu0 %292
    %296 = vset.pattern.permute.xlu0 0
    %297 = vperm.xlu0 %296, %v259
    %v298 = vpop.permute.xlu0 %297
    %v308 = vunpack.c.l.b16 %v240
    %v309 = vunpack.c.l.b16 %v241
    %v310 = vunpack.c.l.b16 %v242
    %v311 = vunpack.c.l.b16 %v243
    %v312 = vunpack.c.l.b16 %v244
    %v313 = vunpack.c.l.b16 %v245
    %v314 = vunpack.c.l.b16 %v246
    %v315 = vunpack.c.l.b16 %v247
    %v316 = vpack.c.b16 %v309, %v308
    %v317 = vpack.c.b16 %v311, %v310
    %v318 = vpack.c.b16 %v313, %v312
    %v319 = vpack.c.b16 %v315, %v314
    %vm320 = vcmask 523264
    %v322 = vsel %vm320, %v316, 0
    %v325 = vsel %vm320, %v317, 0
    %v328 = vsel %vm320, %v318, 0
    %v331 = vsel %vm320, %v319, 0
    %333 = vmatprep.subr.bf16.mxu0 0
    %334 = vmatpush1.bf16.msra.mxu0 %v248
    %335 = vmatprep.subr.bf16.mxu0 0
    %336 = vmatpush1.bf16.msra.mxu0 %v249
    %337 = vmatprep.subr.bf16.mxu0 0
    %338 = vmatpush1.bf16.msra.mxu0 %v250
    %339 = vmatprep.subr.bf16.mxu0 0
    %340 = vmatpush1.bf16.msra.mxu0 %v251
    %341 = vmatprep.subr.bf16.mxu0 0
    %342 = vmatpush1.bf16.msra.mxu0 0
    %343 = vmatprep.subr.bf16.mxu0 0
    %344 = vmatpush1.bf16.msra.mxu0 0
    %345 = vmatprep.subr.bf16.mxu0 0
    %346 = vmatpush1.bf16.msra.mxu0 0
    %347 = vmatprep.subr.bf16.mxu0 0
    %348 = vmatpush1.bf16.msra.mxu0 0
    %349 = vmatprep.subr.bf16.mxu0 0
    %350 = vmatpush1.bf16.msra.mxu0 0
    %351 = vmatprep.subr.bf16.mxu0 0
    %352 = vmatpush1.bf16.msra.mxu0 0
    %353 = vmatprep.subr.bf16.mxu0 0
    %354 = vmatpush1.bf16.msra.mxu0 0
    %355 = vmatprep.subr.bf16.mxu0 0
    %356 = vmatpush1.bf16.msra.mxu0 0
    %357 = vmatprep.subr.bf16.mxu0 0
    %358 = vmatpush1.bf16.msra.mxu0 0
    %359 = vmatprep.subr.bf16.mxu0 0
    %360 = vmatpush1.bf16.msra.mxu0 0
    %361 = vmatprep.subr.bf16.mxu0 0
    %362 = vmatpush1.bf16.msra.mxu0 0
    %363 = vmatprep.subr.bf16.mxu0 0
    %364 = vmatpush1.bf16.msra.mxu0 0
    %365 = vmatprep.mubr.bf16.mxu0 0
    %366 = vmatmul.mubr.bf16.gmra.mrb[0].mxu0 %v322
    %v367 = vpop.f32.mrb[0].mxu0
    %v368 = vadd.f32 %v263, %v367
    %v369 = vpop.f32.mrb[0].mxu0
    %v370 = vpop.f32.mrb[0].mxu0
    %v371 = vadd.f32 %v268, %v370
    %v372 = vpop.f32.mrb[0].mxu0
    %373 = vmatprep.mubr.bf16.mxu0 0
    %374 = vmatmul.mubr.bf16.gmra.mrb[0].mxu0 %v325
    %v375 = vpop.f32.mrb[0].mxu0
    %v376 = vadd.f32 %v273, %v375
    %v377 = vpop.f32.mrb[0].mxu0
    %v378 = vpop.f32.mrb[0].mxu0
    %v379 = vadd.f32 %v278, %v378
    %v380 = vpop.f32.mrb[0].mxu0
    %381 = vmatprep.mubr.bf16.mxu0 0
    %382 = vmatmul.mubr.bf16.gmra.mrb[0].mxu0 %v328
    %v383 = vpop.f32.mrb[0].mxu0
    %v384 = vadd.f32 %v283, %v383
    %v385 = vpop.f32.mrb[0].mxu0
    %v386 = vpop.f32.mrb[0].mxu0
    %v387 = vadd.f32 %v288, %v386
    %v388 = vpop.f32.mrb[0].mxu0
    %389 = vmatprep.mubr.bf16.mxu0 0
    %390 = vmatmul.mubr.bf16.gmra.mrb[0].mxu0 %v331
    %v391 = vpop.f32.mrb[0].mxu0
    %v392 = vadd.f32 %v293, %v391
    %v393 = vpop.f32.mrb[0].mxu0
    %v394 = vpop.f32.mrb[0].mxu0
    %v395 = vadd.f32 %v298, %v394
    %v396 = vpop.f32.mrb[0].mxu0
    %397 = vdwg.mxu0
    %v398 = vtanh.pop %v368
    %v399 = vtanh.pop %v371
    %v400 = vtanh.pop %v376
    %v401 = vtanh.pop %v379
    %v402 = vtanh.pop %v384
    %v403 = vtanh.pop %v387
    %v404 = vtanh.pop %v392
    %v405 = vtanh.pop %v395
    %v406 = vld [vmem:[%s5] sm:$0x1]
    %v407 = vpack.c.bf16 %v399, %v398
    %v408 = vpack.c.bf16 %v401, %v400
    %v409 = vpack.c.bf16 %v403, %v402
    %v410 = vpack.c.bf16 %v405, %v404
    %v411 = vld [vmem:[#allocation2] sm:$0x1]
    %413 = vset.pattern.permute.xlu0 0
    %414 = vperm.xlu0 %413, %v411
    %v415 = vpop.permute.xlu0 %414
    %v417 = vlaneseq
    %v418 = vshrl.u32 %v417, 7
    %v419 = vsub.s32 0, %v418
    %v420 = vrot.slane %v415, %v419
    %v422 = vsel %vm320, %v406, 0
    %424 = vmatprep.subr.bf16.mxu0 0
    %425 = vmatpush1.bf16.msra.mxu0 %v407
    %426 = vmatprep.subr.bf16.mxu0 0
    %427 = vmatpush1.bf16.msra.mxu0 %v408
    %428 = vmatprep.subr.bf16.mxu0 0
    %429 = vmatpush1.bf16.msra.mxu0 %v409
    %430 = vmatprep.subr.bf16.mxu0 0
    %431 = vmatpush1.bf16.msra.mxu0 %v410
    %432 = vmatprep.subr.bf16.mxu0 0
    %433 = vmatpush1.bf16.msra.mxu0 0
    %434 = vmatprep.subr.bf16.mxu0 0
    %435 = vmatpush1.bf16.msra.mxu0 0
    %436 = vmatprep.subr.bf16.mxu0 0
    %437 = vmatpush1.bf16.msra.mxu0 0
    %438 = vmatprep.subr.bf16.mxu0 0
    %439 = vmatpush1.bf16.msra.mxu0 0
    %440 = vmatprep.subr.bf16.mxu0 0
    %441 = vmatpush1.bf16.msra.mxu0 0
    %442 = vmatprep.subr.bf16.mxu0 0
    %443 = vmatpush1.bf16.msra.mxu0 0
    %444 = vmatprep.subr.bf16.mxu0 0
    %445 = vmatpush1.bf16.msra.mxu0 0
    %446 = vmatprep.subr.bf16.mxu0 0
    %447 = vmatpush1.bf16.msra.mxu0 0
    %448 = vmatprep.subr.bf16.mxu0 0
    %449 = vmatpush1.bf16.msra.mxu0 0
    %450 = vmatprep.subr.bf16.mxu0 0
    %451 = vmatpush1.bf16.msra.mxu0 0
    %452 = vmatprep.subr.bf16.mxu0 0
    %453 = vmatpush1.bf16.msra.mxu0 0
    %454 = vmatprep.subr.bf16.mxu0 0
    %455 = vmatpush1.bf16.msra.mxu0 0
    %456 = vmatprep.mubr.bf16.mxu0 0
    %457 = vmatmul.mubr.bf16.gmra.mrb[0].mxu0 %v422
    %v458 = vpop.f32.mrb[0].mxu0
    %v459 = vadd.f32 %v420, %v458
    %v460 = vpop.f32.mrb[0].mxu0
    %v461 = vpop.f32.mrb[0].mxu0
    %v462 = vpop.f32.mrb[0].mxu0
    %463 = vdwg.mxu0
    %464 = vst [vmem:[#allocation3] sm:$0x1] %v459
    // Predicated region
    $region30: #{tpu_custom_call.1} parent=1 // pred_check
      _
    $region31: #{tpu_custom_call.1} parent=1 // pred_check_branch
      %466 = sbr.rel (0) target = $region33
    $region32: #{tpu_custom_call.1} parent=1 // pred_region
      %s468 = ssub.s32 16, 16
      %469 = vsyncadd [#allocation4], %s468
      %s471 = sshll.u32 [#allocation3], 4
      %s472 = int_to_ptr.vmem [resolvable:$true] %s471
      %474 = dma.vmem_to_hbm [thread:$0]  %s472, 16, %s7, [#allocation4]
    $region33: #{tpu_custom_call.1} parent=1 // pred_fallthru
      _
    // Predicated region
    $region34: #{tpu_custom_call.1} parent=1 // pred_check
      _
    $region35: #{tpu_custom_call.1} parent=1 // pred_check_branch
      %476 = sbr.rel (0) target = $region37
    $region36: #{tpu_custom_call.1} parent=1 // pred_region
      %477 = dma.done [#allocation4], 16
    $region37: #{tpu_custom_call.1} parent=1 // pred_fallthru
      _
    %478 = vsyncpa [#allocation4], 1

</llo_original>
